<compile_context>
chip_gen: v7x
topology: tpu7x:2x2x1
jax: 0.10.0
libtpu: 0.0.40
codegen_flags: <defaults>
</compile_context>

<pallas_src>
import functools

import numpy as np
import jax
import jax.numpy as jnp
from jax.experimental import pallas as pl
from jax.experimental.pallas import tpu as pltpu


# ----------------------------------------------------------------------------
# Minimal "molecule" container (replaces deepqmc.Molecule for this synthetic
# test): LiH-like system, charges [3, 1], net charge 0, spin 0 -> 4 electrons.
# ----------------------------------------------------------------------------
class Molecule:
    def __init__(self, coords, charges, charge=0, spin=0):
        self.coords = np.asarray(coords, dtype=np.float32)    # (M, 3)
        self.charges = np.asarray(charges, dtype=np.float32)  # (M,)
        self.charge = charge
        self.spin = spin


def _round_up(x, m):
    return -(-x // m) * m


def _detect_num_tensorcores():
    """Best-effort TensorCores-per-chip (2 on v7x, 1 on v5e/v6e)."""
    try:
        info = pltpu.get_tpu_info()
        for attr in ("num_cores", "tensorcores_per_chip", "num_tensorcores"):
            n = getattr(info, attr, None)
            if n:
                return int(n)
    except Exception:
        pass
    try:
        return int(getattr(jax.devices()[0], "num_cores", 1) or 1)
    except Exception:
        return 1


# ----------------------------------------------------------------------------
# Pallas kernel factory: per-batch-tile ln|psi|.
# Nuclear coordinates / charges are tiny deterministic module parameters and
# are baked into the kernel as compile-time constants (no nucleus DMA).
# ----------------------------------------------------------------------------
def _make_wf_kernel(coords, charges, n_elec, needs_cast):
    coords = np.asarray(coords, dtype=np.float32)    # (M, 3)
    charges = np.asarray(charges, dtype=np.float32)  # (M,)
    n_nuc = coords.shape[0]

    def kernel(rs_ref, logpsi_ref):
        # rs_ref block: (3*N_elec, TB) -- sublane rows ordered
        # [x_0..x_{n-1}, y_0..y_{n-1}, z_0..z_{n-1}], batch on the lane axis.
        x = rs_ref[0:n_elec, :]
        y = rs_ref[n_elec:2 * n_elec, :]
        z = rs_ref[2 * n_elec:3 * n_elec, :]
        if needs_cast:                                 # e.g. bf16 inputs
            x = x.astype(jnp.float32)
            y = y.astype(jnp.float32)
            z = z.astype(jnp.float32)

        acc = None                                     # sum_m Z_m |r_i - R_m|
        # M is tiny & static -> unrolled Python loop over nuclei.
        # TODO(synk): for large nuclei counts, fold coords/charges into a VMEM
        # constant and vectorize over nuclei instead of unrolling.
        for m in range(n_nuc):
            dx = x - coords[m, 0]
            dy = y - coords[m, 1]
            dz = z - coords[m, 2]
            dist = jnp.sqrt(dx * dx + dy * dy + dz * dz)     # EUP path
            if float(charges[m]) == 1.0:
                term = dist
            else:
                term = jnp.float32(charges[m]) * dist
            acc = term if acc is None else acc + term

        # Sublane (electron) reduction (XLU) -> lane-dense (1, TB) output.
        logpsi_ref[...] = -jnp.sum(acc, axis=0, keepdims=True)

    return kernel


# ----------------------------------------------------------------------------
# JAX/Pallas port of the WaveFunction module.
# ----------------------------------------------------------------------------
class WaveFunction:
    """Trial wave function; interface matches deepqmc's base class.

    Shape:
        - Input rs (a.u.): (batch, N_elec, 3)
        - Output1 ln|psi|:  (batch,)
        - Output2 sgn psi:  (batch,)
    """

    def __init__(self, mol, batch_tile=4096):
        self.mol = mol
        n_elec = int(mol.charges.sum() - mol.charge)
        self.n_up = (n_elec + mol.spin) // 2
        self.n_down = (n_elec - mol.spin) // 2
        self.n_elec = n_elec
        # Lane-axis tile cap; multiple of 128. VMEM is never the limit for
        # this kernel (even on v7x's 64 MiB): a (3*N_elec, tb) f32 block is
        # ~12*4*tb bytes, < 1 MiB at tb=16384 double-buffered. Tile choice is
        # driven by grid-step overhead and (on 2-TC chips) core utilization.
        self.batch_tile = max(128, (int(batch_tile) // 128) * 128)
        self._num_cores = _detect_num_tensorcores()
        self._fwd_fused = jax.jit(
            functools.partial(self._forward_impl, allow_fusion=True))
        self._fwd_plain = jax.jit(
            functools.partial(self._forward_impl, allow_fusion=False))
        self._use_fusion = True

    def tracked_parameters(self):
        return ()

    @property
    def spin_slices(self):
        return (slice(None, self.n_up), slice(self.n_up, None))

    def pop_charges(self):
        return jnp.zeros_like(jnp.asarray(self.mol.charges))

    def _pick_tile(self, batch):
        tb = min(self.batch_tile, _round_up(batch, 128))
        # Generation-aware split: only multi-TensorCore chips (v7x) get a
        # 2-way split, and only when each half stays >= 512 lanes. On 1-TC
        # chips (v5e/v6e) extra grid steps are pure overhead and narrow tiles
        # fall far off the HBM roofline.
        if self._num_cores >= 2 and batch >= 1024:
            tb = min(tb, _round_up(-(-batch // 2), 128))
        return max(128, tb)

    def _forward_impl(self, rs, *, allow_fusion):
        # TODO(synk): base-class forward is abstract (returns NotImplemented);
        # a deterministic nuclear-cusp mean-field ansatz is used here to
        # exercise the documented (batch, N, 3) -> ((batch,), (batch,))
        # contract.
        if rs.dtype not in (jnp.float32, jnp.bfloat16):
            rs = rs.astype(jnp.float32)
        batch, n_elec, _ = rs.shape
        assert n_elec == self.n_elec

        tb = self._pick_tile(batch)
        n_tiles = pl.cdiv(batch, tb)

        # Layout plumbing: batch onto the lane axis, (coord, electron) merged
        # onto one sublane axis -> (3*N_elec, batch). No whole-array pad:
        # any trailing partial block reads unspecified pad lanes and its
        # out-of-range stores are masked; the kernel has no cross-lane mixing,
        # so pad lanes can never contaminate real outputs.
        rs_t = jnp.transpose(rs, (2, 1, 0)).reshape(3 * n_elec, batch)

        kernel = _make_wf_kernel(
            self.mol.coords, self.mol.charges, n_elec,
            needs_cast=(rs_t.dtype != jnp.float32),
        )

        # TODO(synk): on v7x verify the "parallel" axis actually shards across
        # both TensorCores; if one TC idles, switch to CORE_PARALLEL/core_map.
        logpsi = pl.pallas_call(
            kernel,
            out_shape=jax.ShapeDtypeStruct((1, batch), jnp.float32),
            grid_spec=pltpu.PrefetchScalarGridSpec(
                num_scalar_prefetch=0,
                grid=(n_tiles,),
                in_specs=[
                    pl.BlockSpec((3 * n_elec, tb), lambda i: (0, i)),
                ],
                out_specs=pl.BlockSpec((1, tb), lambda i: (0, i)),
            ),
            compiler_params=pltpu.CompilerParams(
                dimension_semantics=("parallel",),
                allow_input_fusion=[True] if allow_fusion else None,
            ),
        )(rs_t)

        logpsi = logpsi.reshape(batch)
        # This ansatz is strictly positive -> sign is a compile-time constant;
        # no need to compute/DMA it from the kernel.
        sign = jnp.ones((batch,), jnp.float32)
        return logpsi, sign

    def forward(self, rs):
        rs = jnp.asarray(rs)
        if self._use_fusion:
            try:
                return self._fwd_fused(rs)
            except Exception:
                # Toolchain rejected allow_input_fusion for this producer;
                # fall back permanently to the no-fusion compile.
                self._use_fusion = False
        return self._fwd_plain(rs)

    __call__ = forward


# ----------------------------------------------------------------------------
# Reference (pure JAX) for correctness check.
# ----------------------------------------------------------------------------
def _reference_forward(rs, coords, charges):
    rs = jnp.asarray(rs, jnp.float32)
    coords = jnp.asarray(coords, jnp.float32)
    charges = jnp.asarray(charges, jnp.float32)
    diff = rs[:, :, None, :] - coords[None, None, :, :]          # (B,N,M,3)
    dist = jnp.sqrt(jnp.sum(diff * diff, axis=-1))               # (B,N,M)
    logpsi = -jnp.sum(charges[None, None, :] * dist, axis=(1, 2))
    return logpsi, jnp.ones_like(logpsi)


if __name__ == "__main__":
    # LiH-like molecule: Z = [3, 1], charge 0, spin 0 -> 4 electrons (2 up, 2 dn)
    mol = Molecule(
        coords=[[0.0, 0.0, 0.0], [0.0, 0.0, 3.015]],
        charges=[3.0, 1.0],
        charge=0,
        spin=0,
    )
    wf = WaveFunction(mol)
    assert wf.n_up == 2 and wf.n_down == 2
    assert wf.spin_slices == (slice(None, 2), slice(2, None))
    assert np.all(np.asarray(wf.pop_charges()) == 0.0)

    # Case 1: aligned batch (256 -> single 256-lane tile).
    batch = 256
    rs = jax.random.normal(jax.random.PRNGKey(0), (batch, wf.n_elec, 3),
                           dtype=jnp.float32)
    logpsi, sign = wf(rs)
    jax.block_until_ready((logpsi, sign))
    ref_logpsi, ref_sign = _reference_forward(rs, mol.coords, mol.charges)
    np.testing.assert_allclose(np.asarray(logpsi), np.asarray(ref_logpsi),
                               rtol=1e-5, atol=1e-5)
    np.testing.assert_array_equal(np.asarray(sign), np.asarray(ref_sign))
    assert logpsi.shape == (batch,) and sign.shape == (batch,)

    # Case 2: ragged batch (200 -> trailing partial block, no wrapper pad).
    batch2 = 200
    rs2 = jax.random.normal(jax.random.PRNGKey(1),
                            (batch2, wf.n_elec, 3), dtype=jnp.float32)
    logpsi2, sign2 = wf(rs2)
    jax.block_until_ready((logpsi2, sign2))
    ref_logpsi2, _ = _reference_forward(rs2, mol.coords, mol.charges)
    np.testing.assert_allclose(np.asarray(logpsi2), np.asarray(ref_logpsi2),
                               rtol=1e-5, atol=1e-5)
    assert logpsi2.shape == (batch2,) and sign2.shape == (batch2,)

    # Case 3: tiny batch (8 -> single fully-partial block).
    batch3 = 8
    rs3 = jax.random.normal(jax.random.PRNGKey(2),
                            (batch3, wf.n_elec, 3), dtype=jnp.float32)
    logpsi3, _ = wf(rs3)
    jax.block_until_ready(logpsi3)
    ref_logpsi3, _ = _reference_forward(rs3, mol.coords, mol.charges)
    np.testing.assert_allclose(np.asarray(logpsi3), np.asarray(ref_logpsi3),
                               rtol=1e-5, atol=1e-5)

    # Case 4: force a multi-tile grid (tile cap 128, batch 256 -> 2 steps).
    wf_small = WaveFunction(mol, batch_tile=128)
    logpsi4, _ = wf_small(rs)
    jax.block_until_ready(logpsi4)
    np.testing.assert_allclose(np.asarray(logpsi4), np.asarray(ref_logpsi),
                               rtol=1e-5, atol=1e-5)

    print("KERNEL_OK")
</pallas_src>

<mosaic_0001>
module attributes {stable_mosaic.version = 11 : i64} {
  func.func @kernel(%arg0: i32, %arg1: memref<12x256xf32, #tpu.memory_space<vmem>>, %arg2: memref<1x256xf32, #tpu.memory_space<vmem>>) attributes {dimension_semantics = [#tpu.dimension_semantics<parallel>], iteration_bounds = array<i64: 1>, scalar_prefetch = 0 : i64, scratch_operands = 0 : i64, tpu.core_type = #tpu.core_type<tc>, window_params = [{transform_indices = @transform_0, window_bounds = array<i64: 12, 256>}, {transform_indices = @transform_1, window_bounds = array<i64: 1, 256>}]} {
    %c0 = arith.constant 0 : index
    %c0_0 = arith.constant 0 : index
    %0 = vector.load %arg1[%c0, %c0_0] : memref<12x256xf32, #tpu.memory_space<vmem>>, vector<4x256xf32>
    %c4 = arith.constant 4 : index
    %c0_1 = arith.constant 0 : index
    %1 = vector.load %arg1[%c4, %c0_1] : memref<12x256xf32, #tpu.memory_space<vmem>>, vector<4x256xf32>
    %c8 = arith.constant 8 : index
    %c0_2 = arith.constant 0 : index
    %2 = vector.load %arg1[%c8, %c0_2] : memref<12x256xf32, #tpu.memory_space<vmem>>, vector<4x256xf32>
    %cst = arith.constant 0.000000e+00 : f32
    %3 = vector.broadcast %cst : f32 to vector<4x256xf32>
    %4 = arith.subf %0, %3 : vector<4x256xf32>
    %cst_3 = arith.constant 0.000000e+00 : f32
    %5 = vector.broadcast %cst_3 : f32 to vector<4x256xf32>
    %6 = arith.subf %1, %5 : vector<4x256xf32>
    %cst_4 = arith.constant 0.000000e+00 : f32
    %7 = vector.broadcast %cst_4 : f32 to vector<4x256xf32>
    %8 = arith.subf %2, %7 : vector<4x256xf32>
    %9 = arith.mulf %4, %4 : vector<4x256xf32>
    %10 = arith.mulf %6, %6 : vector<4x256xf32>
    %11 = arith.addf %9, %10 : vector<4x256xf32>
    %12 = arith.mulf %8, %8 : vector<4x256xf32>
    %13 = arith.addf %11, %12 : vector<4x256xf32>
    %14 = math.sqrt %13 : vector<4x256xf32>
    %cst_5 = arith.constant 3.000000e+00 : f32
    %15 = vector.broadcast %cst_5 : f32 to vector<4x256xf32>
    %16 = arith.mulf %15, %14 : vector<4x256xf32>
    %cst_6 = arith.constant 0.000000e+00 : f32
    %17 = vector.broadcast %cst_6 : f32 to vector<4x256xf32>
    %18 = arith.subf %0, %17 : vector<4x256xf32>
    %cst_7 = arith.constant 0.000000e+00 : f32
    %19 = vector.broadcast %cst_7 : f32 to vector<4x256xf32>
    %20 = arith.subf %1, %19 : vector<4x256xf32>
    %cst_8 = arith.constant 3.015000e+00 : f32
    %21 = vector.broadcast %cst_8 : f32 to vector<4x256xf32>
    %22 = arith.subf %2, %21 : vector<4x256xf32>
    %23 = arith.mulf %18, %18 : vector<4x256xf32>
    %24 = arith.mulf %20, %20 : vector<4x256xf32>
    %25 = arith.addf %23, %24 : vector<4x256xf32>
    %26 = arith.mulf %22, %22 : vector<4x256xf32>
    %27 = arith.addf %25, %26 : vector<4x256xf32>
    %28 = math.sqrt %27 : vector<4x256xf32>
    %29 = arith.addf %16, %28 : vector<4x256xf32>
    %cst_9 = arith.constant dense<0.000000e+00> : vector<256xf32>
    %30 = vector.multi_reduction <add>, %29, %cst_9 [0] : vector<4x256xf32> to vector<256xf32>
    %31 = vector.shape_cast %30 : vector<256xf32> to vector<1x256xf32>
    %cst_10 = arith.constant 0.000000e+00 : f32
    %32 = vector.broadcast %cst_10 : f32 to vector<1x256xf32>
    %33 = arith.subf %32, %31 : vector<1x256xf32>
    %c0_11 = arith.constant 0 : index
    %c0_12 = arith.constant 0 : index
    %34 = vector.load %arg2[%c0_11, %c0_12] : memref<1x256xf32, #tpu.memory_space<vmem>>, vector<1x256xf32>
    tpu.vector_store %arg2[%c0_11, %c0_12], %33 {strides = array<i32>} : memref<1x256xf32, #tpu.memory_space<vmem>>, vector<1x256xf32>,
    return
  }
  func.func @transform_0(%arg0: i32) -> (i32, i32) {
    %c0_i32 = arith.constant 0 : i32
    %c0_i32_0 = arith.constant 0 : i32
    return %c0_i32, %arg0 : i32, i32
  }
  func.func @transform_1(%arg0: i32) -> (i32, i32) {
    %c0_i32 = arith.constant 0 : i32
    %c0_i32_0 = arith.constant 0 : i32
    return %c0_i32, %arg0 : i32, i32
  }
}

module attributes {stable_mosaic.version = 11 : i64} {
  func.func @kernel(%arg0: i32, %arg1: memref<12x256xf32, #tpu.memory_space<vmem>>, %arg2: memref<1x256xf32, #tpu.memory_space<vmem>>) attributes {dimension_semantics = [#tpu.dimension_semantics<parallel>], iteration_bounds = array<i64: 1>, scalar_prefetch = 0 : i64, scratch_operands = 0 : i64, tpu.core_type = #tpu.core_type<tc>, window_params = [{transform_indices = @transform_0, window_bounds = array<i64: 12, 256>}, {transform_indices = @transform_1, window_bounds = array<i64: 1, 256>}]} {
    %c0 = arith.constant 0 : index
    %c0_0 = arith.constant 0 : index
    %0 = vector.load %arg1[%c0, %c0_0] : memref<12x256xf32, #tpu.memory_space<vmem>>, vector<4x256xf32>
    %c4 = arith.constant 4 : index
    %c0_1 = arith.constant 0 : index
    %1 = vector.load %arg1[%c4, %c0_1] : memref<12x256xf32, #tpu.memory_space<vmem>>, vector<4x256xf32>
    %c8 = arith.constant 8 : index
    %c0_2 = arith.constant 0 : index
    %2 = vector.load %arg1[%c8, %c0_2] : memref<12x256xf32, #tpu.memory_space<vmem>>, vector<4x256xf32>
    %cst = arith.constant 0.000000e+00 : f32
    %3 = vector.broadcast %cst : f32 to vector<4x256xf32>
    %4 = arith.subf %0, %3 : vector<4x256xf32>
    %cst_3 = arith.constant 0.000000e+00 : f32
    %5 = vector.broadcast %cst_3 : f32 to vector<4x256xf32>
    %6 = arith.subf %1, %5 : vector<4x256xf32>
    %cst_4 = arith.constant 0.000000e+00 : f32
    %7 = vector.broadcast %cst_4 : f32 to vector<4x256xf32>
    %8 = arith.subf %2, %7 : vector<4x256xf32>
    %9 = arith.mulf %4, %4 : vector<4x256xf32>
    %10 = arith.mulf %6, %6 : vector<4x256xf32>
    %11 = arith.addf %9, %10 : vector<4x256xf32>
    %12 = arith.mulf %8, %8 : vector<4x256xf32>
    %13 = arith.addf %11, %12 : vector<4x256xf32>
    %14 = math.sqrt %13 : vector<4x256xf32>
    %cst_5 = arith.constant 3.000000e+00 : f32
    %15 = vector.broadcast %cst_5 : f32 to vector<4x256xf32>
    %16 = arith.mulf %15, %14 : vector<4x256xf32>
    %cst_6 = arith.constant 0.000000e+00 : f32
    %17 = vector.broadcast %cst_6 : f32 to vector<4x256xf32>
    %18 = arith.subf %0, %17 : vector<4x256xf32>
    %cst_7 = arith.constant 0.000000e+00 : f32
    %19 = vector.broadcast %cst_7 : f32 to vector<4x256xf32>
    %20 = arith.subf %1, %19 : vector<4x256xf32>
    %cst_8 = arith.constant 3.015000e+00 : f32
    %21 = vector.broadcast %cst_8 : f32 to vector<4x256xf32>
    %22 = arith.subf %2, %21 : vector<4x256xf32>
    %23 = arith.mulf %18, %18 : vector<4x256xf32>
    %24 = arith.mulf %20, %20 : vector<4x256xf32>
    %25 = arith.addf %23, %24 : vector<4x256xf32>
    %26 = arith.mulf %22, %22 : vector<4x256xf32>
    %27 = arith.addf %25, %26 : vector<4x256xf32>
    %28 = math.sqrt %27 : vector<4x256xf32>
    %29 = arith.addf %16, %28 : vector<4x256xf32>
    %cst_9 = arith.constant dense<0.000000e+00> : vector<256xf32>
    %30 = vector.multi_reduction <add>, %29, %cst_9 [0] : vector<4x256xf32> to vector<256xf32>
    %31 = vector.shape_cast %30 : vector<256xf32> to vector<1x256xf32>
    %cst_10 = arith.constant 0.000000e+00 : f32
    %32 = vector.broadcast %cst_10 : f32 to vector<1x256xf32>
    %33 = arith.subf %32, %31 : vector<1x256xf32>
    %c0_11 = arith.constant 0 : index
    %c0_12 = arith.constant 0 : index
    %34 = vector.load %arg2[%c0_11, %c0_12] : memref<1x256xf32, #tpu.memory_space<vmem>>, vector<1x256xf32>
    tpu.vector_store %arg2[%c0_11, %c0_12], %33 {strides = array<i32>} : memref<1x256xf32, #tpu.memory_space<vmem>>, vector<1x256xf32>,
    return
  }
  func.func @transform_0(%arg0: i32) -> (i32, i32) {
    %c0_i32 = arith.constant 0 : i32
    %c0_i32_0 = arith.constant 0 : i32
    return %c0_i32, %arg0 : i32, i32
  }
  func.func @transform_1(%arg0: i32) -> (i32, i32) {
    %c0_i32 = arith.constant 0 : i32
    %c0_i32_0 = arith.constant 0 : i32
    return %c0_i32, %arg0 : i32, i32
  }
}

</mosaic_0001>

<llo_original>
// kernel: _forward_impl.1
$region0: #{_forward_impl.1}
  #allocation0 [shape = 'u32[]', space=smem, size = 0x4, offset = 0x4, fixed_abs, tag = 'smem constant byte address 0x4 - core index']
  #allocation1 [shape = 'u32[144,128]{1,0:T(1,128)}', space=vmem, size = 0x12000, scoped, tag = 'internal scratch']
  %s0 = inlined_call_operand.vmem [shape: f32[12,256], index: 0, kind: input, shape index: {}]
  %s1 = inlined_call_operand.hbm [shape: f32[1,256], index: 1, kind: output, shape index: {}]
  %s2 = sld [smem:[#allocation0]]
  $region14: #{_forward_impl.1} parent=0
    _
  %s4 = ssub.s32 1, %s2
  %s5 = scalar_select 0, %s4, %s2
  $region1: #{_forward_impl.1} parent=0
    #allocation2 [shape = 'u8[1024]{0}', space=vmem, size = 0x400, scoped, tag = 'output window, operand 0, single buffered']
    #allocation3 [shape = 's32[1]{0}', space=sflag, size = 0x4, scoped, tag = 'scoped memory for _forward_impl.1']
    %6 = vsyncpa [#allocation3], 0
    // Predicated region
    $region2: #{_forward_impl.1} parent=1 // pred_check
      _
    $region3: #{_forward_impl.1} parent=1 // pred_check_branch
      %8 = sbr.rel (0) target = $region5
    $region4: #{_forward_impl.1} parent=1 // pred_region
      _
    $region5: #{_forward_impl.1} parent=1 // pred_fallthru
      _
    %v9 = vld [vmem:[%s0] sm:$0xf]
    %v10 = vld [vmem:[%s0 + $0x8] sm:$0xf]
    %v11 = vld [vmem:[%s0] sm:$0xf0]
    %v12 = vld [vmem:[%s0 + $0x8] sm:$0xf0]
    %v13 = vld [vmem:[%s0 + $0x10] sm:$0xf]
    %v14 = vld [vmem:[%s0 + $0x18] sm:$0xf]
    %v15 = vmul.f32 %v9, %v9
    %v16 = vmul.f32 %v10, %v10
    %v17 = vmul.f32 %v11, %v11
    %v18 = vmul.f32 %v12, %v12
    %v21 = vrot.slane %v17, 4
    %v22 = vrot.slane %v18, 4
    %v25 = vadd.f32 %v15, %v21
    %v26 = vadd.f32 %v16, %v22
    %v27 = vmul.f32 %v13, %v13
    %v28 = vmul.f32 %v14, %v14
    %v29 = vadd.f32 %v25, %v27
    %v30 = vadd.f32 %v26, %v28
    %v31 = vrsqrt.pop %v29
    %v32 = vmul.f32 %v29, %v31
    %vm33 = vcmp.eq.f32.partialorder %v29, inf
    %v34 = vsel %vm33, %v29, %v32
    %vm35 = vcmp.eq.f32.partialorder %v29, 0.0
    %v36 = vand.u32 %v29, 2147483648
    %v37 = vsel %vm35, %v36, %v34
    %v38 = vrsqrt.pop %v30
    %v39 = vmul.f32 %v30, %v38
    %vm40 = vcmp.eq.f32.partialorder %v30, inf
    %v41 = vsel %vm40, %v30, %v39
    %vm42 = vcmp.eq.f32.partialorder %v30, 0.0
    %v43 = vand.u32 %v30, 2147483648
    %v44 = vsel %vm42, %v43, %v41
    %v45 = vmul.f32 %v37, 3.0
    %v46 = vmul.f32 %v44, 3.0
    %v47 = vsub.f32 %v13, 3.015
    %v48 = vsub.f32 %v14, 3.015
    %v49 = vmul.f32 %v47, %v47
    %v50 = vmul.f32 %v48, %v48
    %v51 = vadd.f32 %v25, %v49
    %v52 = vadd.f32 %v26, %v50
    %v53 = vrsqrt.pop %v51
    %v54 = vmul.f32 %v51, %v53
    %vm55 = vcmp.eq.f32.partialorder %v51, inf
    %v56 = vsel %vm55, %v51, %v54
    %vm57 = vcmp.eq.f32.partialorder %v51, 0.0
    %v58 = vand.u32 %v51, 2147483648
    %v59 = vsel %vm57, %v58, %v56
    %v60 = vrsqrt.pop %v52
    %v61 = vmul.f32 %v52, %v60
    %vm62 = vcmp.eq.f32.partialorder %v52, inf
    %v63 = vsel %vm62, %v52, %v61
    %vm64 = vcmp.eq.f32.partialorder %v52, 0.0
    %v65 = vand.u32 %v52, 2147483648
    %v66 = vsel %vm64, %v65, %v63
    %v67 = vadd.f32 %v45, %v59
    %v68 = vadd.f32 %v46, %v66
    %vm69 = vcmask 1043456
    %v70 = vsel %vm69, %v67, 0.0
    %v71 = vrot.slane %v70, 4
    %v72 = vadd.f32 %v70, %v71
    %v73 = vrot.slane %v72, 2
    %v74 = vadd.f32 %v72, %v73
    %v75 = vrot.slane %v74, 1
    %v76 = vadd.f32 %v74, %v75
    %v77 = vsel %vm69, %v68, 0.0
    %v78 = vrot.slane %v77, 4
    %v79 = vadd.f32 %v77, %v78
    %v80 = vrot.slane %v79, 2
    %v81 = vadd.f32 %v79, %v80
    %v82 = vrot.slane %v81, 1
    %v83 = vadd.f32 %v81, %v82
    %v84 = vsub.f32 0.0, %v76
    %v85 = vsub.f32 0.0, %v83
    %v88 = vcombine.low %v84, %v85
    %v90 = vunpack.c.l.s4 1966171168
    %v91 = vunpack.c.0.s8 %v90
    %v92 = vlaneseq
    %v93 = vshrl.u32 %v92, 7
    %v94 = vsub.s32 %v91, %v93
    %v95 = vrot.slane %v88, %v94
    %v97 = vunpack.c.l.s4 1966171168
    %v98 = vunpack.c.0.s8 %v97
    %v99 = vlaneseq
    %v100 = vshrl.u32 %v99, 7
    %v101 = vsub.s32 %v98, %v100
    %v102 = vrot.slane %v95, %v101
    %v104 = vlaneseq
    %vm105 = vcmp.ge.s32.totalorder %v104, 0
    %vm106 = vcmp.lt.s32.totalorder %v104, 256
    %vm107 = vmand %vm105, %vm106
    %108 = vst.msk [vmem:[#allocation2] sm:$0x3] %vm107, %v102
    // Predicated region
    $region6: #{_forward_impl.1} parent=1 // pred_check
      _
    $region7: #{_forward_impl.1} parent=1 // pred_check_branch
      %110 = sbr.rel (0) target = $region9
    $region8: #{_forward_impl.1} parent=1 // pred_region
      %s112 = ssub.s32 32, 32
      %113 = vsyncadd [#allocation3], %s112
      %s115 = sshll.u32 [#allocation2], 4
      %s116 = int_to_ptr.vmem [resolvable:$true] %s115
      %118 = dma.vmem_to_hbm [thread:$0]  %s116, 32, %s1, [#allocation3]
    $region9: #{_forward_impl.1} parent=1 // pred_fallthru
      _
    // Predicated region
    $region10: #{_forward_impl.1} parent=1 // pred_check
      _
    $region11: #{_forward_impl.1} parent=1 // pred_check_branch
      %120 = sbr.rel (0) target = $region13
    $region12: #{_forward_impl.1} parent=1 // pred_region
      %121 = dma.done [#allocation3], 32
    $region13: #{_forward_impl.1} parent=1 // pred_fallthru
      _
    %122 = vsyncpa [#allocation3], 1

// kernel: _forward_impl.1
$region0: #{_forward_impl.1}
  #allocation0 [shape = 'u32[]', space=smem, size = 0x4, offset = 0x4, fixed_abs, tag = 'smem constant byte address 0x4 - core index']
  #allocation1 [shape = 'u32[144,128]{1,0:T(1,128)}', space=vmem, size = 0x12000, scoped, tag = 'internal scratch']
  %s0 = inlined_call_operand.vmem [shape: f32[12,256], index: 0, kind: input, shape index: {}]
  %s1 = inlined_call_operand.hbm [shape: f32[1,256], index: 1, kind: output, shape index: {}]
  %s2 = sld [smem:[#allocation0]]
  $region14: #{_forward_impl.1} parent=0
    _
  %s4 = ssub.s32 1, %s2
  %s5 = scalar_select 0, %s4, %s2
  $region1: #{_forward_impl.1} parent=0
    #allocation2 [shape = 'u8[1024]{0}', space=vmem, size = 0x400, scoped, tag = 'output window, operand 0, single buffered']
    #allocation3 [shape = 's32[1]{0}', space=sflag, size = 0x4, scoped, tag = 'scoped memory for _forward_impl.1']
    %6 = vsyncpa [#allocation3], 0
    // Predicated region
    $region2: #{_forward_impl.1} parent=1 // pred_check
      _
    $region3: #{_forward_impl.1} parent=1 // pred_check_branch
      %8 = sbr.rel (0) target = $region5
    $region4: #{_forward_impl.1} parent=1 // pred_region
      _
    $region5: #{_forward_impl.1} parent=1 // pred_fallthru
      _
    %v9 = vld [vmem:[%s0] sm:$0xf]
    %v10 = vld [vmem:[%s0 + $0x8] sm:$0xf]
    %v11 = vld [vmem:[%s0] sm:$0xf0]
    %v12 = vld [vmem:[%s0 + $0x8] sm:$0xf0]
    %v13 = vld [vmem:[%s0 + $0x10] sm:$0xf]
    %v14 = vld [vmem:[%s0 + $0x18] sm:$0xf]
    %v15 = vmul.f32 %v9, %v9
    %v16 = vmul.f32 %v10, %v10
    %v17 = vmul.f32 %v11, %v11
    %v18 = vmul.f32 %v12, %v12
    %v21 = vrot.slane %v17, 4
    %v22 = vrot.slane %v18, 4
    %v25 = vadd.f32 %v15, %v21
    %v26 = vadd.f32 %v16, %v22
    %v27 = vmul.f32 %v13, %v13
    %v28 = vmul.f32 %v14, %v14
    %v29 = vadd.f32 %v25, %v27
    %v30 = vadd.f32 %v26, %v28
    %v31 = vrsqrt.pop %v29
    %v32 = vmul.f32 %v29, %v31
    %vm33 = vcmp.eq.f32.partialorder %v29, inf
    %v34 = vsel %vm33, %v29, %v32
    %vm35 = vcmp.eq.f32.partialorder %v29, 0.0
    %v36 = vand.u32 %v29, 2147483648
    %v37 = vsel %vm35, %v36, %v34
    %v38 = vrsqrt.pop %v30
    %v39 = vmul.f32 %v30, %v38
    %vm40 = vcmp.eq.f32.partialorder %v30, inf
    %v41 = vsel %vm40, %v30, %v39
    %vm42 = vcmp.eq.f32.partialorder %v30, 0.0
    %v43 = vand.u32 %v30, 2147483648
    %v44 = vsel %vm42, %v43, %v41
    %v45 = vmul.f32 %v37, 3.0
    %v46 = vmul.f32 %v44, 3.0
    %v47 = vsub.f32 %v13, 3.015
    %v48 = vsub.f32 %v14, 3.015
    %v49 = vmul.f32 %v47, %v47
    %v50 = vmul.f32 %v48, %v48
    %v51 = vadd.f32 %v25, %v49
    %v52 = vadd.f32 %v26, %v50
    %v53 = vrsqrt.pop %v51
    %v54 = vmul.f32 %v51, %v53
    %vm55 = vcmp.eq.f32.partialorder %v51, inf
    %v56 = vsel %vm55, %v51, %v54
    %vm57 = vcmp.eq.f32.partialorder %v51, 0.0
    %v58 = vand.u32 %v51, 2147483648
    %v59 = vsel %vm57, %v58, %v56
    %v60 = vrsqrt.pop %v52
    %v61 = vmul.f32 %v52, %v60
    %vm62 = vcmp.eq.f32.partialorder %v52, inf
    %v63 = vsel %vm62, %v52, %v61
    %vm64 = vcmp.eq.f32.partialorder %v52, 0.0
    %v65 = vand.u32 %v52, 2147483648
    %v66 = vsel %vm64, %v65, %v63
    %v67 = vadd.f32 %v45, %v59
    %v68 = vadd.f32 %v46, %v66
    %vm69 = vcmask 1043456
    %v70 = vsel %vm69, %v67, 0.0
    %v71 = vrot.slane %v70, 4
    %v72 = vadd.f32 %v70, %v71
    %v73 = vrot.slane %v72, 2
    %v74 = vadd.f32 %v72, %v73
    %v75 = vrot.slane %v74, 1
    %v76 = vadd.f32 %v74, %v75
    %v77 = vsel %vm69, %v68, 0.0
    %v78 = vrot.slane %v77, 4
    %v79 = vadd.f32 %v77, %v78
    %v80 = vrot.slane %v79, 2
    %v81 = vadd.f32 %v79, %v80
    %v82 = vrot.slane %v81, 1
    %v83 = vadd.f32 %v81, %v82
    %v84 = vsub.f32 0.0, %v76
    %v85 = vsub.f32 0.0, %v83
    %v88 = vcombine.low %v84, %v85
    %v90 = vunpack.c.l.s4 1966171168
    %v91 = vunpack.c.0.s8 %v90
    %v92 = vlaneseq
    %v93 = vshrl.u32 %v92, 7
    %v94 = vsub.s32 %v91, %v93
    %v95 = vrot.slane %v88, %v94
    %v97 = vunpack.c.l.s4 1966171168
    %v98 = vunpack.c.0.s8 %v97
    %v99 = vlaneseq
    %v100 = vshrl.u32 %v99, 7
    %v101 = vsub.s32 %v98, %v100
    %v102 = vrot.slane %v95, %v101
    %v104 = vlaneseq
    %vm105 = vcmp.ge.s32.totalorder %v104, 0
    %vm106 = vcmp.lt.s32.totalorder %v104, 256
    %vm107 = vmand %vm105, %vm106
    %108 = vst.msk [vmem:[#allocation2] sm:$0x3] %vm107, %v102
    // Predicated region
    $region6: #{_forward_impl.1} parent=1 // pred_check
      _
    $region7: #{_forward_impl.1} parent=1 // pred_check_branch
      %110 = sbr.rel (0) target = $region9
    $region8: #{_forward_impl.1} parent=1 // pred_region
      %s112 = ssub.s32 32, 32
      %113 = vsyncadd [#allocation3], %s112
      %s115 = sshll.u32 [#allocation2], 4
      %s116 = int_to_ptr.vmem [resolvable:$true] %s115
      %118 = dma.vmem_to_hbm [thread:$0]  %s116, 32, %s1, [#allocation3]
    $region9: #{_forward_impl.1} parent=1 // pred_fallthru
      _
    // Predicated region
    $region10: #{_forward_impl.1} parent=1 // pred_check
      _
    $region11: #{_forward_impl.1} parent=1 // pred_check_branch
      %120 = sbr.rel (0) target = $region13
    $region12: #{_forward_impl.1} parent=1 // pred_region
      %121 = dma.done [#allocation3], 32
    $region13: #{_forward_impl.1} parent=1 // pred_fallthru
      _
    %122 = vsyncpa [#allocation3], 1

</llo_original>
